<compile_context>
chip_gen: v7x
topology: tpu7x:2x2x1
jax: 0.10.0
libtpu: 0.0.40
codegen_flags: <defaults>
</compile_context>

<pallas_src>
import numpy as np
import jax
import jax.numpy as jnp
from jax.experimental import pallas as pl
from jax.experimental.pallas import tpu as pltpu

try:  # prefer scipy if present
    from scipy.optimize import linear_sum_assignment as _scipy_lsa
except Exception:  # pragma: no cover
    _scipy_lsa = None


# ----------------------------------------------------------------------------
# Pallas kernel 1: per-layer weighted cross-entropy sums (label smoothing 0.1)
#   grid = (L,)   inputs: logits [L, M, C+1] f32, targets [L, M, 1] int32,
#                 class weights [1, C+1]
#   output [L, 1, 128]: lane 0 = sum_i (0.9*w_y*(-logp_y) + 0.1/C*sum_c w_c*(-logp_c))
#                       lane 1 = sum_i w_{y_i}
#   (this matches torch F.cross_entropy(weight=w, label_smoothing=0.1):
#    numerator / sum_i w_{y_i})
# ----------------------------------------------------------------------------
def _ce_kernel(logits_ref, tgt_ref, w_ref, out_ref):
    logits = logits_ref[0].astype(jnp.float32)           # [M, Cp1]
    tgt = tgt_ref[0]                                      # [M, 1] int32
    w = w_ref[...].astype(jnp.float32)                    # [1, Cp1]
    cp1 = logits.shape[-1]

    m = jnp.max(logits, axis=-1, keepdims=True)
    lse = m + jnp.log(jnp.sum(jnp.exp(logits - m), axis=-1, keepdims=True))
    logp = logits - lse
    wlogp = w * logp

    cls = jax.lax.broadcasted_iota(jnp.int32, (1, cp1), 1)
    onehot = (tgt == cls).astype(jnp.float32)             # [M, Cp1] built in-kernel
    q = 0.9 * onehot + (0.1 / cp1)                        # smoothed target distribution
    weighted = -jnp.sum(q * wlogp, axis=-1, keepdims=True)      # [M,1]
    wy = jnp.sum(onehot * w, axis=-1, keepdims=True)            # [M,1]

    lane = jax.lax.broadcasted_iota(jnp.int32, (1, 128), 1)
    out_ref[0] = (jnp.where(lane == 0, jnp.sum(weighted), 0.0)
                  + jnp.where(lane == 1, jnp.sum(wy), 0.0))


def ce_losses_batched(logits_all, tgt_all, w_row):
    L, M, Cp1 = logits_all.shape
    grid_spec = pltpu.PrefetchScalarGridSpec(
        num_scalar_prefetch=0,
        grid=(L,),
        in_specs=[pl.BlockSpec((1, M, Cp1), lambda l: (l, 0, 0)),
                  pl.BlockSpec((1, M, 1), lambda l: (l, 0, 0)),
                  pl.BlockSpec((1, Cp1), lambda l: (0, 0))],
        out_specs=pl.BlockSpec((1, 1, 128), lambda l: (l, 0, 0)),
    )
    return pl.pallas_call(
        _ce_kernel,
        out_shape=jax.ShapeDtypeStruct((L, 1, 128), jnp.float32),
        grid_spec=grid_spec,
        compiler_params=pltpu.CompilerParams(dimension_semantics=("parallel",)),
    )(logits_all, tgt_all, w_row)


# ----------------------------------------------------------------------------
# Pallas kernel 2: batched per-set mask losses, tiled over the superpoint dim.
#   grid = (S sets "parallel", N tiles "arbitrary")
#   scalar prefetch: k_arr [S] valid rows, n_arr [S] valid columns per set
#   inputs : pm/tm [S, K_max, N_pad] bf16, ps [S, K_max, 1] f32
#   output : [S, 1, 128] with lanes [bce, dice, giou, score_loss]
# ----------------------------------------------------------------------------
def _mask_losses_kernel(k_ref, n_ref, pm_ref, tm_ref, ps_ref, out_ref,
                        inter_acc, ssig_acc, st_acc, ih_acc, sib_acc, bce_acc,
                        cmax_acc, cmin_acc):
    s = pl.program_id(0)
    n = pl.program_id(1)
    n_last = pl.num_programs(1) - 1
    K = pm_ref.shape[1]
    TN = pm_ref.shape[2]
    k_valid = k_ref[s]
    n_valid = n_ref[s]
    eps = 1e-6

    @pl.when(n == 0)
    def _():
        inter_acc[...] = jnp.zeros_like(inter_acc)
        ssig_acc[...] = jnp.zeros_like(ssig_acc)
        st_acc[...] = jnp.zeros_like(st_acc)
        ih_acc[...] = jnp.zeros_like(ih_acc)
        sib_acc[...] = jnp.zeros_like(sib_acc)
        bce_acc[...] = jnp.zeros_like(bce_acc)
        cmax_acc[...] = jnp.full_like(cmax_acc, -1.0)
        cmin_acc[...] = jnp.full_like(cmin_acc, 1e9)

    # Tiles entirely beyond this set's real superpoint count are skipped
    # (their DMA was suppressed by the clamped index_map as well).
    @pl.when(n * TN < n_valid)
    def _compute():
        x = pm_ref[0].astype(jnp.float32)            # [K, TN] mask logits
        t = tm_ref[0].astype(jnp.float32)            # [K, TN] binary gt (0 in padding)

        col_id = jax.lax.broadcasted_iota(jnp.int32, (1, TN), 1) + n * TN
        col_ok = (col_id < n_valid).astype(jnp.float32)              # [1, TN]

        sig = jax.nn.sigmoid(x)
        # BCE-with-logits: log1p(exp(-|x|)) == -log(max(sig, 1-sig)) (1 fewer EUP op)
        bce = jnp.maximum(x, 0.0) - x * t - jnp.log(jnp.maximum(sig, 1.0 - sig))

        # gt is zero in padded rows/cols (jnp.pad), so only pred-derived terms
        # need the column mask; padded rows are masked once at finalize.
        sig_m = sig * col_ok
        bce_m = bce * col_ok
        ib = jnp.where(x >= 0.0, col_ok, 0.0)        # hard pred (x>=0), col-masked

        inter_acc[...] += jnp.sum(sig * t, axis=-1, keepdims=True)
        ssig_acc[...] += jnp.sum(sig_m, axis=-1, keepdims=True)
        st_acc[...] += jnp.sum(t, axis=-1, keepdims=True)
        ih_acc[...] += jnp.sum(ib * t, axis=-1, keepdims=True)
        sib_acc[...] += jnp.sum(ib, axis=-1, keepdims=True)
        bce_acc[...] += jnp.sum(bce_m, axis=-1, keepdims=True)

        # gt column extent (reference GIoULoss .nonzero()[:, -1]); kept as lane
        # vectors (exact for column indices < 2^24), reduced only at the end.
        colf = col_id.astype(jnp.float32)
        col_any = jnp.max(t, axis=0, keepdims=True)                  # [1, TN]
        cmax_acc[...] = jnp.maximum(cmax_acc[...],
                                    jnp.where(col_any > 0.0, colf, -1.0))
        cmin_acc[...] = jnp.minimum(cmin_acc[...],
                                    jnp.where(col_any > 0.0, colf, 1e9))

    @pl.when(n == n_last)
    def _finalize():
        k_f = k_valid.astype(jnp.float32)
        n_f = n_valid.astype(jnp.float32)
        row_id = jax.lax.broadcasted_iota(jnp.int32, (K, 1), 0)
        row_ok = (row_id < k_valid).astype(jnp.float32)              # [K,1]

        inter = inter_acc[...]
        s_sig = ssig_acc[...]
        s_t = st_acc[...]
        ih = ih_acc[...]
        s_ib = sib_acc[...]

        # BCE mean over K*N real elements
        bce_mean = jnp.sum(bce_acc[...] * row_ok) / (k_f * n_f)

        # soft dice (smooth=1), mean over real rows
        dice = 1.0 - (2.0 * inter + 1.0) / (s_sig + s_t + 1.0)
        dice_mean = jnp.sum(dice * row_ok) / k_f

        # GIoU-style mask loss; pred sigmoid > 0 everywhere -> pred span = N-1
        # TODO(synk): ignores the (practically impossible) case of sigmoid
        # underflowing to exactly 0 everywhere; the reference relies on
        # .nonzero() of the sigmoid.  Degenerate single-column gt (area == 0)
        # reproduces the reference's behavior exactly.
        union = s_sig + s_t - inter
        iou = inter / (union + eps)
        cmax = jnp.max(cmax_acc[...])
        cmin = jnp.min(cmin_acc[...])
        has_gt = cmax >= 0.0
        area = (n_f - 1.0) * (cmax - cmin)
        giou = iou - (area - union) / (area + eps)
        giou_loss = jnp.where(has_gt,
                              jnp.sum((1.0 - giou) * row_ok) / k_f,
                              jnp.sum((1.0 - iou) * row_ok) / k_f)

        # combined hard/soft IoU target + quality-weighted MSE score loss
        uh = s_ib + s_t - ih
        iou_hard = (ih + eps) / (uh + eps)
        iou_soft = (inter + eps) / (union + eps)
        tgt_score = 0.8 * iou_hard + 0.2 * iou_soft                  # [K,1]
        ps = ps_ref[0].astype(jnp.float32)                           # [K,1]
        sel = jnp.where(tgt_score > 0.5, row_ok, 0.0)
        cnt = jnp.sum(sel)
        num = jnp.sum(sel * tgt_score * (ps - tgt_score) ** 2)
        score_loss = jnp.where(cnt > 0.0, num / jnp.maximum(cnt, 1.0), 0.0)

        lane = jax.lax.broadcasted_iota(jnp.int32, (1, 128), 1)
        out_ref[0] = (jnp.where(lane == 0, bce_mean, 0.0)
                      + jnp.where(lane == 1, dice_mean, 0.0)
                      + jnp.where(lane == 2, giou_loss, 0.0)
                      + jnp.where(lane == 3, score_loss, 0.0))


def mask_losses_batched(pm_all, tm_all, ps_all, k_arr, n_arr, tile_n):
    S, K_max, N_pad = pm_all.shape
    assert N_pad % tile_n == 0
    n_tiles = N_pad // tile_n

    # Clamp the tile index so fully-padded tiles re-use the previous block
    # (suppresses the redundant DMA); the compute is skipped via pl.when.
    def data_map(s, n, k, nn):
        last = (nn[s] + (tile_n - 1)) // tile_n - 1
        return (s, 0, jnp.minimum(n, last))

    grid_spec = pltpu.PrefetchScalarGridSpec(
        num_scalar_prefetch=2,
        grid=(S, n_tiles),
        in_specs=[
            pl.BlockSpec((1, K_max, tile_n), data_map),
            pl.BlockSpec((1, K_max, tile_n), data_map),
            pl.BlockSpec((1, K_max, 1), lambda s, n, k, nn: (s, 0, 0)),
        ],
        out_specs=pl.BlockSpec((1, 1, 128), lambda s, n, k, nn: (s, 0, 0)),
        scratch_shapes=[
            pltpu.VMEM((K_max, 1), jnp.float32),   # soft intersection
            pltpu.VMEM((K_max, 1), jnp.float32),   # sum sigmoid (col-masked)
            pltpu.VMEM((K_max, 1), jnp.float32),   # sum gt
            pltpu.VMEM((K_max, 1), jnp.float32),   # hard intersection
            pltpu.VMEM((K_max, 1), jnp.float32),   # sum hard pred (col-masked)
            pltpu.VMEM((K_max, 1), jnp.float32),   # BCE row sums (col-masked)
            pltpu.VMEM((1, tile_n), jnp.float32),  # gt col max (lane vector)
            pltpu.VMEM((1, tile_n), jnp.float32),  # gt col min (lane vector)
        ],
    )

    # Explicit VMEM budget: the two double-buffered bf16 inputs dominate.
    per_buf = K_max * tile_n * pm_all.dtype.itemsize
    est = 2 * 2 * per_buf                       # pm + tm, double-buffered
    est += 2 * (K_max * 4 + 128 * 4)            # ps + out, double-buffered
    est += 6 * K_max * 4 + 2 * tile_n * 4       # scratch
    vmem_limit = int(min(64 << 20, max(32 << 20, 4 * est)))

    return pl.pallas_call(
        _mask_losses_kernel,
        out_shape=jax.ShapeDtypeStruct((S, 1, 128), jnp.float32),
        grid_spec=grid_spec,
        compiler_params=pltpu.CompilerParams(
            dimension_semantics=("parallel", "arbitrary"),
            vmem_limit_bytes=vmem_limit),
    )(k_arr, n_arr, pm_all, tm_all, ps_all)


# ----------------------------------------------------------------------------
# Glue: batched Lovasz hinge (sort-based, plain JAX) and host-side Hungarian
# ----------------------------------------------------------------------------
def _lovasz_hinge_flat(logits, labels, valid):
    # 'logits' here are sigmoid values (the reference feeds sigmoid in).
    signs = 2.0 * labels - 1.0
    # Padded elements get error -1 (< any real error in [0,2]) so they sort
    # last and contribute relu(-1)=0 to the final dot product.
    errors = jnp.where(valid > 0.0, 1.0 - logits * signs, -1.0)
    order = jnp.argsort(-errors)
    errors_sorted = errors[order]
    gt_sorted = labels[order]
    gts = jnp.sum(gt_sorted)
    inter = gts - jnp.cumsum(gt_sorted)
    union = gts + jnp.cumsum(1.0 - gt_sorted)
    jaccard = 1.0 - inter / union
    grad = jnp.concatenate([jaccard[:1], jaccard[1:] - jaccard[:-1]])
    return jnp.dot(jax.nn.relu(errors_sorted), grad)


@jax.jit
def lovasz_batched(pm_all, tm_all, k_arr, n_arr):
    # TODO(synk): the reference applies torch.sort along dim 0 of a 2-D tensor
    # and torch.dot (1-D only), which errors at runtime on [K, N] inputs; we
    # implement the standard flattened Lovasz hinge.  Data-dependent sort stays
    # in plain JAX, batched over all matched sets in one vmapped call.
    S, K, Npad = pm_all.shape

    def one(pm, tm, k, n):
        row_ok = jnp.arange(K, dtype=jnp.int32)[:, None] < k
        col_ok = jnp.arange(Npad, dtype=jnp.int32)[None, :] < n
        valid = (row_ok & col_ok).astype(jnp.float32).reshape(-1)
        logits = jax.nn.sigmoid(pm.astype(jnp.float32)).reshape(-1)
        labels = (tm.astype(jnp.float32) > 0.5).astype(jnp.float32).reshape(-1)
        return _lovasz_hinge_flat(logits, labels, valid)

    return jax.vmap(one)(pm_all, tm_all, k_arr, n_arr)


def _hungarian_numpy(cost):
    # O(n^3) shortest-augmenting-path assignment (Jonker-Volgenant style).
    cost = np.asarray(cost, np.float64)
    transposed = cost.shape[0] > cost.shape[1]
    if transposed:
        cost = cost.T
    n, m = cost.shape
    INF = 1e18
    u = np.zeros(n + 1)
    v = np.zeros(m + 1)
    p = np.zeros(m + 1, dtype=np.int64)
    way = np.zeros(m + 1, dtype=np.int64)
    for i in range(1, n + 1):
        p[0] = i
        j0 = 0
        minv = np.full(m + 1, INF)
        used = np.zeros(m + 1, dtype=bool)
        while True:
            used[j0] = True
            i0 = p[j0]
            cur = cost[i0 - 1, :] - u[i0] - v[1:]
            upd = (~used[1:]) & (cur < minv[1:])
            minv[1:] = np.where(upd, cur, minv[1:])
            way[1:] = np.where(upd, j0, way[1:])
            masked = np.where(used[1:], INF, minv[1:])
            j1 = int(np.argmin(masked)) + 1
            delta = masked[j1 - 1]
            used_idx = np.nonzero(used)[0]
            np.add.at(u, p[used_idx], delta)
            v[used_idx] -= delta
            minv[~used] -= delta
            j0 = j1
            if p[j0] == 0:
                break
        while True:
            j1 = way[j0]
            p[j0] = p[j1]
            j0 = j1
            if j0 == 0:
                break
    rows, cols = [], []
    for j in range(1, m + 1):
        if p[j] != 0:
            rows.append(p[j] - 1)
            cols.append(j - 1)
    rows = np.asarray(rows, np.int64)
    cols = np.asarray(cols, np.int64)
    if transposed:
        rows, cols = cols, rows
    order = np.argsort(rows)
    return rows[order], cols[order]


def _linear_sum_assignment(cost):
    if _scipy_lsa is not None:
        r, c = _scipy_lsa(np.asarray(cost))
        return np.asarray(r, np.int64), np.asarray(c, np.int64)
    return _hungarian_numpy(cost)


def _np_softmax(x):
    x = x - x.max(-1, keepdims=True)
    e = np.exp(x)
    return e / e.sum(-1, keepdims=True)


# ----------------------------------------------------------------------------
# EnhancedCriterion (JAX / Pallas version)
# ----------------------------------------------------------------------------
class EnhancedCriterionPallas:
    def __init__(self, ignore_label=-100,
                 loss_weight=(1.0, 1.0, 1.0, 1.0, 1.0),
                 cost_weight=(1.0, 1.0, 1.0, 1.0, 1.0),
                 non_object_weight=0.1, num_class=18,
                 use_aux_loss=True, aux_loss_weight=0.5,
                 num_points_thresh=10, mask_tile_n=2048):
        self.num_class = num_class
        cw = np.ones(num_class + 1, np.float32)
        cw[-1] = non_object_weight
        self.class_weight = jnp.asarray(cw)
        # nn.Parameter(torch.ones(5)) -> deterministic ones at init
        self.loss_weight = jnp.ones(5, jnp.float32)
        self.cost_weight = np.asarray(cost_weight, np.float32)
        self.ignore_label = ignore_label
        self.use_aux_loss = use_aux_loss
        self.aux_loss_weight = aux_loss_weight
        self.num_points_thresh = num_points_thresh
        assert mask_tile_n % 128 == 0
        self.mask_tile_n = mask_tile_n

    # ---- matcher (host-side; @torch.no_grad() in the reference) ----
    def _match_layer(self, labels_host_l, insts_host):
        # TODO(synk): Hungarian matching is data-dependent host control flow and
        # has no clean Pallas equivalent; it stays on the host.
        indices = []
        for b in range(labels_host_l.shape[0]):
            gt_labels, mask_points = insts_host[b]
            G = gt_labels.shape[0]
            if G == 0:
                indices.append((np.zeros(0, np.int64), np.zeros(0, np.int64)))
                continue
            prob = _np_softmax(labels_host_l[b])
            cost_class = -prob[:, gt_labels]                       # [Q, G]
            # NOTE: the focal/dice/giou/lovasz cost terms of the reference matcher
            # are scalars (constant over the whole cost matrix) and cannot change
            # the optimal assignment; only cost_class matters here.
            valid = mask_points >= self.num_points_thresh
            if not valid.any():
                indices.append((np.zeros(0, np.int64), np.zeros(0, np.int64)))
                continue
            C = float(self.cost_weight[0]) * cost_class[:, valid]
            indices.append(_linear_sum_assignment(C))
        return indices

    # ---- forward ----
    def __call__(self, pred, insts):
        layers = [{'labels': pred['labels'], 'scores': pred['scores'],
                   'masks': pred['masks']}]
        if self.use_aux_loss and 'aux_outputs' in pred:
            layers += [{'labels': a['labels'], 'scores': a['scores'],
                        'masks': a['masks']} for a in pred['aux_outputs']]
        L = len(layers)
        B, Q, Cp1 = np.shape(layers[0]['labels'])

        # one host transfer of all class logits (matching is host control flow)
        labels_stack = jnp.stack(
            [jnp.asarray(l['labels'], jnp.float32) for l in layers])  # [L,B,Q,Cp1]
        labels_host = np.asarray(jax.device_get(labels_stack))

        insts_host = []
        for b in range(B):
            gl = np.asarray(insts[b][0]).astype(np.int64)
            mp = np.asarray(jax.device_get(insts[b][1])).sum(-1)
            insts_host.append((gl, mp))

        all_indices = [self._match_layer(labels_host[l], insts_host)
                       for l in range(L)]

        # --- classification loss (all layers in one Pallas call, int targets) ---
        tgt_class = np.full((L, B, Q), self.num_class, np.int32)
        for l in range(L):
            for b, (iq, ig) in enumerate(all_indices[l]):
                if len(iq):
                    tgt_class[l, b, iq] = insts_host[b][0][ig]
        tgt_all = jnp.asarray(tgt_class.reshape(L, B * Q, 1), jnp.int32)
        logits_all = labels_stack.reshape(L, B * Q, Cp1)
        ce_res = ce_losses_batched(logits_all, tgt_all,
                                   self.class_weight.reshape(1, Cp1))
        class_losses = ce_res[:, 0, 0] / ce_res[:, 0, 1]          # [L]

        # --- assemble all matched sets across layers & batch items ---
        entries = []
        for l in range(L):
            for b, (iq, ig) in enumerate(all_indices[l]):
                if insts_host[b][0].shape[0] == 0:
                    continue
                if len(iq) == 0:
                    # TODO(synk): reference takes means over empty tensors (NaN)
                    # when no gt mask passes num_points_thresh; skipped here.
                    continue
                # bf16 halves HBM traffic for the mem-bound mask kernel; all
                # accumulation happens in f32 inside the kernel.
                pm = jnp.asarray(layers[l]['masks'][b], jnp.bfloat16)[iq]
                tm = jnp.asarray(insts[b][1], jnp.bfloat16)[ig]
                ps = jnp.asarray(layers[l]['scores'][b], jnp.float32)[iq]
                entries.append(dict(layer=l, pm=pm, tm=tm, ps=ps,
                                    k=int(len(iq)), n=int(pm.shape[-1])))

        zero = jnp.float32(0.0)
        keys = ('mask_bce', 'mask_dice', 'mask_giou', 'mask_lovasz', 'score_loss')
        layer_ml = [{k: zero for k in keys} for _ in range(L)]
        layer_tm = [0] * L

        if entries:
            S = len(entries)
            K_max = int(np.ceil(max(e['k'] for e in entries) / 8.0) * 8)
            tile_n = self.mask_tile_n
            N_pad = int(np.ceil(max(e['n'] for e in entries) / tile_n) * tile_n)
            # TODO(synk): the padded copies cost one extra HBM round trip of the
            # hot arrays; an in-kernel row gather (memory_space=pl.ANY + per-row
            # DMA) would remove it.
            pm_all = jnp.stack([jnp.pad(e['pm'], ((0, K_max - e['k']),
                                                  (0, N_pad - e['n'])))
                                for e in entries])
            tm_all = jnp.stack([jnp.pad(e['tm'], ((0, K_max - e['k']),
                                                  (0, N_pad - e['n'])))
                                for e in entries])
            ps_all = jnp.stack([jnp.pad(e['ps'], ((0, K_max - e['k']), (0, 0)))
                                for e in entries])
            k_arr = jnp.asarray([e['k'] for e in entries], jnp.int32)
            n_arr = jnp.asarray([e['n'] for e in entries], jnp.int32)

            res = mask_losses_batched(pm_all, tm_all, ps_all, k_arr, n_arr, tile_n)
            per_set = res[:, 0, :4]                               # [S, 4]
            lov_all = lovasz_batched(pm_all, tm_all, k_arr, n_arr)  # [S]

            for l in range(L):
                idxs = [i for i, e in enumerate(entries) if e['layer'] == l]
                layer_tm[l] = len(idxs)
                if not idxs:
                    continue
                sel = np.asarray(idxs, np.int32)
                sums = jnp.sum(per_set[sel], axis=0) / len(idxs)
                lsum = jnp.sum(lov_all[sel]) / len(idxs)
                layer_ml[l] = {'mask_bce': sums[0], 'mask_dice': sums[1],
                               'mask_giou': sums[2], 'score_loss': sums[3],
                               'mask_lovasz': lsum}

        # --- combine (no host syncs; everything stays on device) ---
        lw = self.loss_weight
        loss_out = {}
        total = lw[0] * class_losses[0]
        loss_out['cls_loss'] = class_losses[0]
        if layer_tm[0] > 0:
            for k in keys:
                loss_out[k] = layer_ml[0][k]
                total = total + (lw[2] if k == 'score_loss' else lw[1]) * layer_ml[0][k]
        for l in range(1, L):
            ml = layer_ml[l]
            cls = class_losses[l]
            layer_total = (lw[0] * cls
                           + lw[1] * (ml['mask_bce'] + ml['mask_dice']
                                      + ml['mask_giou'] + ml['mask_lovasz']) / 4.0
                           + lw[2] * ml['score_loss'])
            total = total + self.aux_loss_weight * layer_total
            i = l - 1
            loss_out[f'layer_{i}_cls_loss'] = cls
            if layer_tm[l] > 0:
                for k in keys:
                    loss_out[f'layer_{i}_{k}'] = ml[k]
        loss_out['loss'] = total

        # single host materialization at the end (replaces per-loss float() syncs)
        host = jax.device_get(loss_out)
        loss_out = {k: float(v) for k, v in host.items()}
        return total, loss_out


# ----------------------------------------------------------------------------
# Demo
# ----------------------------------------------------------------------------
if __name__ == "__main__":
    key = jax.random.PRNGKey(0)
    B, Q, num_class = 2, 8, 4
    Cp1 = num_class + 1
    Ns = [600, 420]          # per-batch superpoint counts (ragged -> tests masking)
    Gs = [3, 2]

    ks = jax.random.split(key, 20)
    pred_labels = jax.random.normal(ks[0], (B, Q, Cp1), jnp.float32)
    pred_scores = jax.random.normal(ks[1], (B, Q, 1), jnp.float32)
    pred_masks = [jax.random.normal(ks[2 + b], (Q, Ns[b]), jnp.float32) * 2.0
                  for b in range(B)]

    insts = []
    for b in range(B):
        gt_labels = np.asarray(jax.random.randint(ks[6 + b], (Gs[b],), 0, num_class),
                               np.int64)
        gt_spmasks = jax.random.bernoulli(ks[8 + b], 0.5,
                                          (Gs[b], Ns[b])).astype(jnp.float32)
        insts.append((gt_labels, gt_spmasks))

    # one auxiliary decoder layer to exercise the aux-loss path
    aux = {
        'labels': jax.random.normal(ks[10], (B, Q, Cp1), jnp.float32),
        'scores': jax.random.normal(ks[11], (B, Q, 1), jnp.float32),
        'masks': [jax.random.normal(ks[12 + b], (Q, Ns[b]), jnp.float32) * 2.0
                  for b in range(B)],
    }
    pred = {'labels': pred_labels, 'scores': pred_scores, 'masks': pred_masks,
            'aux_outputs': [aux]}

    criterion = EnhancedCriterionPallas(num_class=num_class,
                                        non_object_weight=0.1,
                                        use_aux_loss=True,
                                        aux_loss_weight=0.5,
                                        num_points_thresh=10,
                                        mask_tile_n=256)   # small tile -> exercises
                                                           # multi-tile + tile-skip path
    total_loss, loss_out = criterion(pred, insts)
    jax.block_until_ready(total_loss)
    print("KERNEL_OK")
</pallas_src>

<mosaic_0001>
module attributes {stable_mosaic.version = 11 : i64} {
  func.func @_ce_kernel(%arg0: i32, %arg1: memref<1x16x5xf32, #tpu.memory_space<vmem>>, %arg2: memref<1x16x1xi32, #tpu.memory_space<vmem>>, %arg3: memref<1x5xf32, #tpu.memory_space<vmem>>, %arg4: memref<1x1x128xf32, #tpu.memory_space<vmem>>) attributes {dimension_semantics = [#tpu.dimension_semantics<parallel>], iteration_bounds = array<i64: 2>, scalar_prefetch = 0 : i64, scratch_operands = 0 : i64, tpu.core_type = #tpu.core_type<tc>, window_params = [{transform_indices = @transform_0, window_bounds = array<i64: 1, 16, 5>}, {transform_indices = @transform_1, window_bounds = array<i64: 1, 16, 1>}, {pipeline_mode = #tpu.pipeline_mode<synchronous>, transform_indices = @transform_2, window_bounds = array<i64: 1, 5>}, {transform_indices = @transform_3, window_bounds = array<i64: 1, 1, 128>}]} {
    %c0 = arith.constant 0 : index
    %c0_0 = arith.constant 0 : index
    %c0_1 = arith.constant 0 : index
    %0 = vector.load %arg1[%c0, %c0_0, %c0_1] : memref<1x16x5xf32, #tpu.memory_space<vmem>>, vector<1x16x5xf32>
    %1 = vector.shape_cast %0 : vector<1x16x5xf32> to vector<16x5xf32>
    %c0_2 = arith.constant 0 : index
    %c0_3 = arith.constant 0 : index
    %c0_4 = arith.constant 0 : index
    %2 = vector.load %arg2[%c0_2, %c0_3, %c0_4] : memref<1x16x1xi32, #tpu.memory_space<vmem>>, vector<1x16x1xi32>
    %3 = vector.shape_cast %2 : vector<1x16x1xi32> to vector<16x1xi32>
    %c0_5 = arith.constant 0 : index
    %c0_6 = arith.constant 0 : index
    %4 = vector.load %arg3[%c0_5, %c0_6] : memref<1x5xf32, #tpu.memory_space<vmem>>, vector<1x5xf32>
    %cst = arith.constant dense<0xFF800000> : vector<16xf32>
    %5 = vector.multi_reduction <maximumf>, %1, %cst [1] : vector<16x5xf32> to vector<16xf32>
    %6 = vector.shape_cast %5 : vector<16xf32> to vector<16x1xf32>
    %7 = vector.broadcast %6 : vector<16x1xf32> to vector<16x5xf32>
    %8 = arith.subf %1, %7 : vector<16x5xf32>
    %9 = math.exp %8 : vector<16x5xf32>
    %cst_7 = arith.constant dense<0.000000e+00> : vector<16xf32>
    %10 = vector.multi_reduction <add>, %9, %cst_7 [1] : vector<16x5xf32> to vector<16xf32>
    %11 = vector.shape_cast %10 : vector<16xf32> to vector<16x1xf32>
    %12 = math.log %11 : vector<16x1xf32>
    %13 = arith.addf %6, %12 : vector<16x1xf32>
    %14 = vector.broadcast %13 : vector<16x1xf32> to vector<16x5xf32>
    %15 = arith.subf %1, %14 : vector<16x5xf32>
    %16 = vector.broadcast %4 : vector<1x5xf32> to vector<16x5xf32>
    %17 = arith.mulf %16, %15 : vector<16x5xf32>
    %18 = tpu.iota {dimensions = array<i32: 1>} : vector<1x5xi32>
    %19 = vector.broadcast %3 : vector<16x1xi32> to vector<16x5xi32>
    %20 = vector.broadcast %18 : vector<1x5xi32> to vector<16x5xi32>
    %21 = arith.cmpi eq, %19, %20 : vector<16x5xi32>
    %22 = arith.extui %21 : vector<16x5xi1> to vector<16x5xi32>
    %23 = arith.sitofp %22 : vector<16x5xi32> to vector<16x5xf32>
    %cst_8 = arith.constant 0.899999976 : f32
    %24 = vector.broadcast %cst_8 : f32 to vector<16x5xf32>
    %25 = arith.mulf %24, %23 : vector<16x5xf32>
    %cst_9 = arith.constant 2.000000e-02 : f32
    %26 = vector.broadcast %cst_9 : f32 to vector<16x5xf32>
    %27 = arith.addf %25, %26 : vector<16x5xf32>
    %28 = arith.mulf %27, %17 : vector<16x5xf32>
    %cst_10 = arith.constant dense<0.000000e+00> : vector<16xf32>
    %29 = vector.multi_reduction <add>, %28, %cst_10 [1] : vector<16x5xf32> to vector<16xf32>
    %30 = vector.shape_cast %29 : vector<16xf32> to vector<16x1xf32>
    %cst_11 = arith.constant 0.000000e+00 : f32
    %31 = vector.broadcast %cst_11 : f32 to vector<16x1xf32>
    %32 = arith.subf %31, %30 : vector<16x1xf32>
    %33 = vector.broadcast %4 : vector<1x5xf32> to vector<16x5xf32>
    %34 = arith.mulf %23, %33 : vector<16x5xf32>
    %cst_12 = arith.constant dense<0.000000e+00> : vector<16xf32>
    %35 = vector.multi_reduction <add>, %34, %cst_12 [1] : vector<16x5xf32> to vector<16xf32>
    %36 = vector.shape_cast %35 : vector<16xf32> to vector<16x1xf32>
    %37 = tpu.iota {dimensions = array<i32: 1>} : vector<1x128xi32>
    %c0_i32 = arith.constant 0 : i32
    %38 = vector.broadcast %c0_i32 : i32 to vector<1x128xi32>
    %39 = arith.cmpi eq, %37, %38 : vector<1x128xi32>
    %40 = vector.shape_cast %32 : vector<16x1xf32> to vector<1x16x1xf32>
    %cst_13 = arith.constant dense<0.000000e+00> : vector<1xf32>
    %41 = vector.multi_reduction <add>, %40, %cst_13 [1, 2] : vector<1x16x1xf32> to vector<1xf32>
    %42 = vector.shape_cast %41 : vector<1xf32> to vector<1x1x1xf32>
    %43 = vector.extract %42[0, 0, 0] : f32 from vector<1x1x1xf32>
    %cst_14 = arith.constant 0.000000e+00 : f32
    %44 = vector.broadcast %43 : f32 to vector<1x128xf32>
    %45 = vector.broadcast %cst_14 : f32 to vector<1x128xf32>
    %46 = arith.select %39, %44, %45 : vector<1x128xi1>, vector<1x128xf32>
    %c1_i32 = arith.constant 1 : i32
    %47 = vector.broadcast %c1_i32 : i32 to vector<1x128xi32>
    %48 = arith.cmpi eq, %37, %47 : vector<1x128xi32>
    %49 = vector.shape_cast %36 : vector<16x1xf32> to vector<1x16x1xf32>
    %cst_15 = arith.constant dense<0.000000e+00> : vector<1xf32>
    %50 = vector.multi_reduction <add>, %49, %cst_15 [1, 2] : vector<1x16x1xf32> to vector<1xf32>
    %51 = vector.shape_cast %50 : vector<1xf32> to vector<1x1x1xf32>
    %52 = vector.extract %51[0, 0, 0] : f32 from vector<1x1x1xf32>
    %cst_16 = arith.constant 0.000000e+00 : f32
    %53 = vector.broadcast %52 : f32 to vector<1x128xf32>
    %54 = vector.broadcast %cst_16 : f32 to vector<1x128xf32>
    %55 = arith.select %48, %53, %54 : vector<1x128xi1>, vector<1x128xf32>
    %56 = arith.addf %46, %55 : vector<1x128xf32>
    %c0_17 = arith.constant 0 : index
    %c0_18 = arith.constant 0 : index
    %c0_19 = arith.constant 0 : index
    %57 = vector.load %arg4[%c0_17, %c0_18, %c0_19] : memref<1x1x128xf32, #tpu.memory_space<vmem>>, vector<1x1x128xf32>
    %58 = vector.shape_cast %57 : vector<1x1x128xf32> to vector<1x128xf32>
    %59 = vector.shape_cast %56 : vector<1x128xf32> to vector<1x1x128xf32>
    tpu.vector_store %arg4[%c0_17, %c0_18, %c0_19], %59 {strides = array<i32>} : memref<1x1x128xf32, #tpu.memory_space<vmem>>, vector<1x1x128xf32>,
    return
  }
  func.func @transform_0(%arg0: i32) -> (i32, i32, i32) {
    %c0_i32 = arith.constant 0 : i32
    %c0_i32_0 = arith.constant 0 : i32
    %c0_i32_1 = arith.constant 0 : i32
    return %arg0, %c0_i32, %c0_i32_0 : i32, i32, i32
  }
  func.func @transform_1(%arg0: i32) -> (i32, i32, i32) {
    %c0_i32 = arith.constant 0 : i32
    %c0_i32_0 = arith.constant 0 : i32
    %c0_i32_1 = arith.constant 0 : i32
    return %arg0, %c0_i32, %c0_i32_0 : i32, i32, i32
  }
  func.func @transform_2(%arg0: i32) -> (i32, i32) {
    %c0_i32 = arith.constant 0 : i32
    %c0_i32_0 = arith.constant 0 : i32
    %c0_i32_1 = arith.constant 0 : i32
    return %c0_i32, %c0_i32_0 : i32, i32
  }
  func.func @transform_3(%arg0: i32) -> (i32, i32, i32) {
    %c0_i32 = arith.constant 0 : i32
    %c0_i32_0 = arith.constant 0 : i32
    %c0_i32_1 = arith.constant 0 : i32
    return %arg0, %c0_i32, %c0_i32_0 : i32, i32, i32
  }
}

</mosaic_0001>

<llo_original>
// kernel: tpu_custom_call.1
$region0: #{tpu_custom_call.1}
  #allocation0 [shape = 'u32[]', space=smem, size = 0x4, offset = 0x4, fixed_abs, tag = 'smem constant byte address 0x4 - core index']
  #allocation1 [shape = 'u32[144,128]{1,0:T(1,128)}', space=vmem, size = 0x12000, scoped, tag = 'internal scratch']
  %s0 = inlined_call_operand.vmem [shape: f32[2,16,5], index: 0, kind: input, shape index: {}]
  %s1 = inlined_call_operand.vmem [shape: s32[2,16,1], index: 1, kind: input, shape index: {}]
  %s2 = inlined_call_operand.vmem [shape: f32[1,5], index: 2, kind: input, shape index: {}]
  %s3 = inlined_call_operand.hbm [shape: f32[2,1,128], index: 3, kind: output, shape index: {}]
  %s4 = sld [smem:[#allocation0]]
  $region45: #{tpu_custom_call.1} parent=0
    _
  %s6 = ssub.s32 1, %s4
  %s7 = scalar_select 0, %s6, %s4
  $region1: #{tpu_custom_call.1} parent=0
    #allocation2 [shape = 'u8[1024]{0}', space=vmem, size = 0x400, scoped, tag = 'output window, operand 0']
    #allocation3 [shape = 's32[2]{0}', space=sflag, size = 0x8, scoped, tag = 'scoped memory for tpu_custom_call.1']
    %8 = vsyncpa [#allocation3], 0
    %s9 = scalar_lea.sflag [#allocation3], 1
    %10 = vsyncpa %s9, 0
    loop: start=0, step=1, limit=4
    $region2: #{tpu_custom_call.1} parent=1 // loop_pre_header
      _
    $region3: #{tpu_custom_call.1} parent=1 // loop_header
      %s12 = sphi 0, %s16
      %p13 = scmp.ge.s32.totalorder %s12, 4
      %s22 = sphi 0, %s24
      %s25 = sphi 0, %s22
      %s26 = sphi 0, %s25
      %s42 = sphi 0, %s26
      %s48 = sphi 0, %s50
      %s51 = sphi 0, %s48
      %s52 = sphi 0, %s51
      %s68 = sphi 0, %s52
      %s72 = sphi 0, %s72
      %s74 = sphi 0, %s72
      %s75 = sphi 0, %s74
      %s89 = sphi 0, %s75
      %s95 = sphi 0, %s97
      %s98 = sphi 0, %s95
      %s99 = sphi 0, %s98
      %s115 = sphi 0, %s99
    $region4: #{tpu_custom_call.1} parent=1 // loop_header_branch
      %15 = sbr.rel (%p13) target = $region8
    $region5: #{tpu_custom_call.1} parent=1 // loop_body
      %s17 = ssub.s32 %s12, 1
      %s18 = ssub.s32 %s12, 2
      %s19 = sadd.s32 %s12, 1
      %s20 = ssub.s32 %s12, %s19
      %p21 = scmp.eq.s32.totalorder %s20, 0
      %s23 = sadd.s32 %s22, 1
      %s24 = scalar_select %p21, %s22, %s23
      %p27 = pneg %p21
      %p28 = scmp.eq.s32.totalorder %s12, 1
      %p29 = por %p27, %p28
      %p30 = scmp.ne.s32.totalorder %s22, %s25
      %p31 = scmp.eq.s32.totalorder %s12, 0
      %p32 = por %p30, %p31
      %p33 = scmp.ne.s32.totalorder %s22, %s25
      %p34 = scmp.eq.s32.totalorder %s17, 1
      %p35 = por %p33, %p34
      %p36 = scmp.ne.s32.totalorder %s25, %s26
      %p37 = scmp.eq.s32.totalorder %s17, 0
      %p38 = por %p36, %p37
      %p39 = scmp.ne.s32.totalorder %s25, %s26
      %p40 = scmp.eq.s32.totalorder %s18, 1
      %p41 = por %p39, %p40
      %p43 = scmp.ne.s32.totalorder %s26, %s42
      %p44 = scmp.eq.s32.totalorder %s18, 0
      %p45 = por %p43, %p44
      %s46 = ssub.s32 %s12, %s19
      %p47 = scmp.eq.s32.totalorder %s46, 0
      %s49 = sadd.s32 %s48, 1
      %s50 = scalar_select %p47, %s48, %s49
      %p53 = pneg %p47
      %p54 = scmp.eq.s32.totalorder %s12, 1
      %p55 = por %p53, %p54
      %p56 = scmp.ne.s32.totalorder %s48, %s51
      %p57 = scmp.eq.s32.totalorder %s12, 0
      %p58 = por %p56, %p57
      %p59 = scmp.ne.s32.totalorder %s48, %s51
      %p60 = scmp.eq.s32.totalorder %s17, 1
      %p61 = por %p59, %p60
      %p62 = scmp.ne.s32.totalorder %s51, %s52
      %p63 = scmp.eq.s32.totalorder %s17, 0
      %p64 = por %p62, %p63
      %p65 = scmp.ne.s32.totalorder %s51, %s52
      %p66 = scmp.eq.s32.totalorder %s18, 1
      %p67 = por %p65, %p66
      %p69 = scmp.ne.s32.totalorder %s52, %s68
      %p70 = scmp.eq.s32.totalorder %s18, 0
      %p71 = por %p69, %p70
      %s73 = sadd.s32 %s72, 1
      %p76 = scmp.eq.s32.totalorder %s12, 1
      %p77 = scmp.ne.s32.totalorder %s72, %s74
      %p78 = scmp.eq.s32.totalorder %s12, 0
      %p79 = por %p77, %p78
      %p80 = scmp.ne.s32.totalorder %s72, %s74
      %p81 = scmp.eq.s32.totalorder %s17, 1
      %p82 = por %p80, %p81
      %p83 = scmp.ne.s32.totalorder %s74, %s75
      %p84 = scmp.eq.s32.totalorder %s17, 0
      %p85 = por %p83, %p84
      %p86 = scmp.ne.s32.totalorder %s74, %s75
      %p87 = scmp.eq.s32.totalorder %s18, 1
      %p88 = por %p86, %p87
      %p90 = scmp.ne.s32.totalorder %s75, %s89
      %p91 = scmp.eq.s32.totalorder %s18, 0
      %p92 = por %p90, %p91
      %s93 = ssub.s32 %s12, %s19
      %p94 = scmp.eq.s32.totalorder %s93, 0
      %s96 = sadd.s32 %s95, 1
      %s97 = scalar_select %p94, %s95, %s96
      %p100 = pneg %p94
      %p101 = scmp.eq.s32.totalorder %s12, 1
      %p102 = por %p100, %p101
      %p103 = scmp.ne.s32.totalorder %s95, %s98
      %p104 = scmp.eq.s32.totalorder %s12, 0
      %p105 = por %p103, %p104
      %p106 = scmp.ne.s32.totalorder %s95, %s98
      %p107 = scmp.eq.s32.totalorder %s17, 1
      %p108 = por %p106, %p107
      %p109 = scmp.ne.s32.totalorder %s98, %s99
      %p110 = scmp.eq.s32.totalorder %s17, 0
      %p111 = por %p109, %p110
      %p112 = scmp.ne.s32.totalorder %s98, %s99
      %p113 = scmp.eq.s32.totalorder %s18, 1
      %p114 = por %p112, %p113
      %p116 = scmp.ne.s32.totalorder %s99, %s115
      %p117 = scmp.eq.s32.totalorder %s18, 0
      %p118 = por %p116, %p117
      %p119 = scmp.le.s32.totalorder 1, %s12
      %p120 = scmp.lt.s32.totalorder %s12, 3
      %p121 = pnand %p119, %p120
      %p122 = pneg %p121
      // Predicated region
      $region9: #{tpu_custom_call.1} parent=5 // pred_check
        _
      $region10: #{tpu_custom_call.1} parent=5 // pred_check_branch
        %124 = sbr.rel (%p121) target = $region12
      $region11: #{tpu_custom_call.1} parent=5 // pred_region
        %s125 = ssub.s32 %s12, 1
        // Predicated region
        $region13: #{tpu_custom_call.1} parent=11 // pred_check
          %p126 = pneg %p85
        $region14: #{tpu_custom_call.1} parent=11 // pred_check_branch
          %128 = sbr.rel (%p126) target = $region16
        $region15: #{tpu_custom_call.1} parent=11 // pred_region
          _
        $region16: #{tpu_custom_call.1} parent=11 // pred_fallthru
          _
      $region12: #{tpu_custom_call.1} parent=5 // pred_fallthru
        _
      %p129 = scmp.lt.s32.totalorder %s12, 2
      // Predicated region
      $region17: #{tpu_custom_call.1} parent=5 // pred_check
        %p130 = pneg %p129
      $region18: #{tpu_custom_call.1} parent=5 // pred_check_branch
        %132 = sbr.rel (%p130) target = $region20
      $region19: #{tpu_custom_call.1} parent=5 // pred_region
        // Predicated region
        $region21: #{tpu_custom_call.1} parent=19 // pred_check
          %p133 = pneg %p32
        $region22: #{tpu_custom_call.1} parent=19 // pred_check_branch
          %135 = sbr.rel (%p133) target = $region24
        $region23: #{tpu_custom_call.1} parent=19 // pred_region
          %p136 = scmp.lt.s32.totalorder %s12, 1
          %s137 = scalar_select %p136, %s12, 1
          %s138 = smul.addr %s137, 2
          %s139 = smul.addr %s138, 8
          %s140 = scalar_lea.vmem %s0, %s139
        $region24: #{tpu_custom_call.1} parent=19 // pred_fallthru
          _
        // Predicated region
        $region25: #{tpu_custom_call.1} parent=19 // pred_check
          %p141 = pneg %p58
        $region26: #{tpu_custom_call.1} parent=19 // pred_check_branch
          %143 = sbr.rel (%p141) target = $region28
        $region27: #{tpu_custom_call.1} parent=19 // pred_region
          %p144 = scmp.lt.s32.totalorder %s12, 1
          %s145 = scalar_select %p144, %s12, 1
          %s146 = smul.addr %s145, 2
          %s147 = smul.addr %s146, 8
          %s148 = scalar_lea.vmem %s1, %s147
        $region28: #{tpu_custom_call.1} parent=19 // pred_fallthru
          _
      $region20: #{tpu_custom_call.1} parent=5 // pred_fallthru
        _
      %p149 = scmp.le.s32.totalorder 1, %s12
      %p150 = scmp.lt.s32.totalorder %s12, 3
      %p151 = pnand %p149, %p150
      %p152 = pneg %p151
      // Predicated region
      $region29: #{tpu_custom_call.1} parent=5 // pred_check
        _
      $region30: #{tpu_custom_call.1} parent=5 // pred_check_branch
        %154 = sbr.rel (%p151) target = $region32
      $region31: #{tpu_custom_call.1} parent=5 // pred_region
        %s155 = ssub.s32 %s12, 1
        %p156 = scmp.lt.s32.totalorder %s17, 1
        %s157 = scalar_select %p156, %s17, 1
        %s158 = smul.addr %s157, 2
        %s159 = smul.addr %s158, 8
        %s160 = scalar_lea.vmem %s0, %s159
        %p161 = pneg %p38
        %p162 = pneg %p35
        %p163 = scmp.lt.s32.totalorder %s17, 1
        %s164 = scalar_select %p163, %s17, 1
        %s165 = smul.addr %s164, 2
        %s166 = smul.addr %s165, 8
        %s167 = scalar_lea.vmem %s1, %s166
        %p168 = pneg %p64
        %p169 = pneg %p61
        %p170 = pneg %p85
        %p171 = pneg %p82
        %p172 = pneg %p111
        %p173 = pneg %p108
        %s174 = sand.u32 %s98, 1
        %s175 = scalar_lea.sflag [#allocation3], %s174
        %s176 = sand.u32 %s98, 1
        %s177 = scalar_lea.vmem [#allocation2], %s176
        %p178 = scmp.lt.s32.totalorder %s17, 1
        %s179 = scalar_select %p178, %s17, 1
        %s180 = smul.addr %s179, 2
        %s181 = smul.addr %s180, 8
        %s182 = scalar_lea.vmem %s0, %s181
        %p183 = scmp.lt.s32.totalorder %s17, 1
        %s184 = scalar_select %p183, %s17, 1
        %s185 = smul.addr %s184, 2
        %s186 = smul.addr %s185, 8
        %s187 = scalar_lea.vmem %s1, %s186
        %v188 = vld [vmem:[%s182] sm:$0xff]
        %v189 = vld [vmem:[%s182 + $0x8] sm:$0xff]
        %v190 = vld [vmem:[%s187] sm:$0xff]
        %v191 = vld [vmem:[%s187 + $0x8] sm:$0xff]
        %v192 = vld [vmem:[%s2] sm:$0x1]
        %vm193 = vcmask 39936
        %v194 = vsel %vm193, %v188, -inf
        %195 = vmax.xlane.f32.xlu0 %v194
        %v196 = vpop.xlane.xlu0 %195
        %v197 = vsel %vm193, %v189, -inf
        %198 = vmax.xlane.f32.xlu0 %v197
        %v199 = vpop.xlane.xlu0 %198
        %v200 = vsub.f32 %v188, %v196
        %v201 = vsub.f32 %v189, %v199
        %v202 = vmul.f32 %v200, 1.442695
        %v203 = vpow.pop %v202
        %v204 = vmul.f32 %v201, 1.442695
        %v205 = vpow.pop %v204
        %v206 = vsel %vm193, %v203, 0.0
        %207 = vadd.xlane.f32.xlu0 %v206
        %v208 = vpop.xlane.xlu0 %207
        %v209 = vsel %vm193, %v205, 0.0
        %210 = vadd.xlane.f32.xlu0 %v209
        %v211 = vpop.xlane.xlu0 %210
        %v212 = vlog2.pop %v208
        %v213 = vmul.f32 %v212, 0.6931472
        %v214 = vlog2.pop %v211
        %v215 = vmul.f32 %v214, 0.6931472
        %v216 = vadd.f32 %v196, %v213
        %v217 = vadd.f32 %v199, %v215
        %v218 = vsub.f32 %v188, %v216
        %v219 = vsub.f32 %v189, %v217
        %v221 = vlaneseq
        %v222 = vshrl.u32 %v221, 7
        %v223 = vsub.s32 0, %v222
        %v224 = vrot.slane %v192, %v223
        %v226 = vmul.f32 %v224, %v218
        %v227 = vmul.f32 %v224, %v219
        %v228 = vlaneseq
        %v229 = vand.u32 %v228, 127
        %230 = vset.pattern.permute.xlu0 0
        %231 = vperm.xlu0 %230, %v190
        %v232 = vpop.permute.xlu0 %231
        %233 = vset.pattern.permute.xlu0 0
        %234 = vperm.xlu0 %233, %v191
        %v235 = vpop.permute.xlu0 %234
        %vm236 = vcmp.eq.s32.totalorder %v232, %v229
        %vm237 = vcmp.eq.s32.totalorder %v235, %v229
        %v238 = vsel %vm236, 1, 0
        %v239 = vsel %vm237, 1, 0
        %v240 = vcvt.s32.f32 %v238
        %v241 = vcvt.s32.f32 %v239
        %v242 = vmul.f32 %v240, 0.9
        %v243 = vmul.f32 %v241, 0.9
        %v244 = vadd.f32 %v242, 0.02
        %v245 = vadd.f32 %v243, 0.02
        %v246 = vmul.f32 %v244, %v226
        %v247 = vmul.f32 %v245, %v227
        %v248 = vsel %vm193, %v246, 0.0
        %249 = vadd.xlane.f32.xlu0 %v248
        %v250 = vpop.xlane.xlu0 %249
        %v251 = vsel %vm193, %v247, 0.0
        %252 = vadd.xlane.f32.xlu0 %v251
        %v253 = vpop.xlane.xlu0 %252
        %v254 = vsub.f32 0.0, %v250
        %v255 = vsub.f32 0.0, %v253
        %v256 = vmul.f32 %v240, %v224
        %v257 = vmul.f32 %v241, %v224
        %v258 = vsel %vm193, %v256, 0.0
        %259 = vadd.xlane.f32.xlu0 %v258
        %v260 = vpop.xlane.xlu0 %259
        %v261 = vsel %vm193, %v257, 0.0
        %262 = vadd.xlane.f32.xlu0 %v261
        %v263 = vpop.xlane.xlu0 %262
        %vm264 = vcmp.eq.s32.totalorder %v229, 0
        %vm265 = vcmask 7168
        %v266 = vsel %vm265, %v254, 0.0
        %v267 = vsel %vm265, %v255, 0.0
        %v268 = vadd.f32 %v266, %v267
        %269 = vadd.xlane.f32.xlu0 %v268
        %v270 = vpop.xlane.xlu0 %269
        %v271 = vrot.slane %v270, 4
        %v272 = vadd.f32 %v270, %v271
        %v273 = vrot.slane %v272, 2
        %v274 = vadd.f32 %v272, %v273
        %v275 = vrot.slane %v274, 1
        %v276 = vadd.f32 %v274, %v275
        %s277 = vtos %v276
        %v278 = vstv %s277
        %v279 = vsel %vm264, %v278, 0.0
        %vm280 = vcmp.eq.s32.totalorder %v229, 1
        %v281 = vsel %vm265, %v260, 0.0
        %v282 = vsel %vm265, %v263, 0.0
        %v283 = vadd.f32 %v281, %v282
        %284 = vadd.xlane.f32.xlu0 %v283
        %v285 = vpop.xlane.xlu0 %284
        %v286 = vrot.slane %v285, 4
        %v287 = vadd.f32 %v285, %v286
        %v288 = vrot.slane %v287, 2
        %v289 = vadd.f32 %v287, %v288
        %v290 = vrot.slane %v289, 1
        %v291 = vadd.f32 %v289, %v290
        %s292 = vtos %v291
        %v293 = vstv %s292
        %v294 = vsel %vm280, %v293, 0.0
        %v295 = vadd.f32 %v279, %v294
        %296 = vst [vmem:[%s177] sm:$0x1] %v295
        %s297 = sand.u32 %s98, 1
        %s298 = scalar_lea.sflag [#allocation3], %s297
        %s299 = sand.u32 %s98, 1
        %s300 = scalar_lea.vmem [#allocation2], %s299
        // Predicated region
        $region33: #{tpu_custom_call.1} parent=31 // pred_check
          %p301 = pneg %p108
        $region34: #{tpu_custom_call.1} parent=31 // pred_check_branch
          %303 = sbr.rel (%p301) target = $region36
        $region35: #{tpu_custom_call.1} parent=31 // pred_region
          %s305 = ssub.s32 16, 16
          %306 = vsyncadd %s298, %s305
          %s307 = smul.addr %s17, 16
          %s308 = scalar_lea.hbm %s3, %s307
          %s310 = sshll.u32 %s300, 4
          %s311 = int_to_ptr.vmem [resolvable:$true] %s310
          %313 = dma.vmem_to_hbm [thread:$0]  %s311, 16, %s308, %s298
        $region36: #{tpu_custom_call.1} parent=31 // pred_fallthru
          _
      $region32: #{tpu_custom_call.1} parent=5 // pred_fallthru
        _
      %p314 = scmp.le.s32.totalorder 2, %s12
      // Predicated region
      $region37: #{tpu_custom_call.1} parent=5 // pred_check
        %p315 = pneg %p314
      $region38: #{tpu_custom_call.1} parent=5 // pred_check_branch
        %317 = sbr.rel (%p315) target = $region40
      $region39: #{tpu_custom_call.1} parent=5 // pred_region
        %s318 = ssub.s32 %s12, 2
        // Predicated region
        $region41: #{tpu_custom_call.1} parent=39 // pred_check
          %p319 = pneg %p114
        $region42: #{tpu_custom_call.1} parent=39 // pred_check_branch
          %321 = sbr.rel (%p319) target = $region44
        $region43: #{tpu_custom_call.1} parent=39 // pred_region
          %s322 = sand.u32 %s99, 1
          %s323 = scalar_lea.sflag [#allocation3], %s322
          %s324 = sand.u32 %s99, 1
          %s325 = scalar_lea.vmem [#allocation2], %s324
          %326 = dma.done %s323, 16
        $region44: #{tpu_custom_call.1} parent=39 // pred_fallthru
          _
      $region40: #{tpu_custom_call.1} parent=5 // pred_fallthru
        _
    $region6: #{tpu_custom_call.1} parent=1 // loop_footer
      %s16 = sadd.s32 1, %s12
    $region7: #{tpu_custom_call.1} parent=1 // loop_footer_branch
      %11 = sbr.rel target = $region3
    $region8: #{tpu_custom_call.1} parent=1 // loop_exit
      _
    %327 = vsyncpa [#allocation3], 1
    %s328 = scalar_lea.sflag [#allocation3], 1
    %329 = vsyncpa %s328, 1

</llo_original>
